<compile_context>
chip_gen: v7x
topology: tpu7x:2x2x1
jax: 0.10.0
libtpu: 0.0.40
codegen_flags: <defaults>
</compile_context>

<pallas_src>
import math

import jax
import jax.numpy as jnp
from jax.experimental import pallas as pl
from jax.experimental.pallas import tpu as pltpu

_INV_SQRT2 = 1.0 / math.sqrt(2.0)


# --------------------------------------------------------------------------
# Kernel (batch-on-lanes / transposed formulation)
# --------------------------------------------------------------------------
def _moe_gating_kernel(x_ref, w1t_ref, w2t_ref, params_ref,
                       gwt_ref, lsum_ref, gsum_ref):
    H = w1t_ref.shape[0]
    E = w2t_ref.shape[0]

    # Packed tiny params: columns are [b1 | gamma | beta | b2] (b2 only uses
    # the first E rows).  Column vectors broadcast along the 128-lane batch.
    params = params_ref[...]                         # [max(H,E), 4]
    b1 = params[:H, 0:1]                             # [H, 1]
    gamma = params[:H, 1:2]                           # [H, 1]
    beta = params[:H, 2:3]                            # [H, 1]
    b2 = params[:E, 3:4]                              # [E, 1]

    # ---- Linear 1 (NT): w1t [H, D] contracted with x [TILE_B, D] -> [H, TILE_B]
    h = jax.lax.dot_general(
        w1t_ref[...], x_ref[...],
        dimension_numbers=(((1,), (1,)), ((), ())),
        preferred_element_type=jnp.float32) + b1

    # ---- LayerNorm over the feature (sublane) axis, eps = 1e-5 (nn.LayerNorm)
    mu = jnp.mean(h, axis=0, keepdims=True)            # [1, TILE_B]
    var = jnp.mean((h - mu) * (h - mu), axis=0, keepdims=True)
    hn = (h - mu) * jax.lax.rsqrt(var + 1e-5)
    hn = hn * gamma + beta

    # ---- exact (erf) GELU — matches nn.GELU() default
    act = 0.5 * hn * (1.0 + jax.lax.erf(hn * _INV_SQRT2))

    # ---- Linear 2: [E, H] @ [H, TILE_B] -> gate logits [E, TILE_B]
    logits = jnp.dot(w2t_ref[...], act, preferred_element_type=jnp.float32) + b2

    # ---- softmax over experts (sublane axis)
    m = jnp.max(logits, axis=0, keepdims=True)          # [1, TILE_B]
    e = jnp.exp(logits - m)
    s = jnp.sum(e, axis=0, keepdims=True)                # [1, TILE_B]
    # Exact reciprocal keeps bit-level fidelity with the reference softmax;
    # the kernel is HBM-bound so the EUP saving of approx=True is negligible.
    gate = e * pl.reciprocal(s, approx=False)            # [E, TILE_B]

    # Lane-dense gate store: [E, TILE_B] with the batch on the 128-lane axis.
    gwt_ref[...] = gate.astype(gwt_ref.dtype)

    # ---- per-tile loss partials (tiny final reductions finish in the wrapper)
    lse = m + jnp.log(s)                                  # [1, TILE_B] logsumexp
    lsum_ref[...] = jnp.sum(lse).reshape(1, 1)            # sum of logsumexp
    gsum_ref[...] = jnp.sum(gate, axis=1, keepdims=True)  # [E, 1] per-expert sums


# --------------------------------------------------------------------------
# VMEM accounting (padding-aware) and tile selection
# --------------------------------------------------------------------------
def _round_up(v, m):
    return -(-int(v) // m) * m


def _padded_bytes(rows, cols, itemsize=4):
    # Physical VMEM footprint of a 2-D f32 tile: sublanes pad to 8, lanes to 128.
    return _round_up(max(rows, 1), 8) * _round_up(max(cols, 1), 128) * itemsize


def _vmem_bytes_needed(tile_b, d, h, e):
    p = max(h, e)
    need = 0
    need += 2 * _padded_bytes(tile_b, d)                     # x tile (double-buffered)
    need += 2 * _padded_bytes(e, tile_b)                      # gate output tile (x2 buffers)
    need += 2 * (_padded_bytes(1, 1) + _padded_bytes(e, 1))   # loss-partial tiles
    need += 2 * (_padded_bytes(h, d) + _padded_bytes(e, h)    # resident weights
                 + _padded_bytes(p, 4))                        # packed params
    need += 8 * _padded_bytes(h, tile_b)                       # h/hn/act/logits/gate temps (generous)
    return need


def _vmem_budget_bytes():
    # Per-generation scoped-VMEM budget: ~3/4 of physical capacity, capped.
    # v7x: 64 MiB total -> ~48 MiB budget; v5e/v6e: 128 MiB -> 96 MiB budget.
    cap = 128 << 20
    try:
        info = pltpu.get_tpu_info()
        cap = int(getattr(info, "vmem_capacity_bytes", cap))
    except Exception:
        pass
    return int(min(cap * 3 // 4, 96 << 20))


_TILE_CANDIDATES = (8192, 4096, 2048, 1024, 512, 256, 128)


def _pick_tile_b(batch, d, h, e, vmem_budget):
    """Largest tile that fits the VMEM budget, preferring >= 2 grid steps
    (megacore sharding on v7x + x-tile DMA double-buffering everywhere)."""
    best = None
    for t in _TILE_CANDIDATES:
        if t > batch or batch % t != 0:
            continue
        if _vmem_bytes_needed(t, d, h, e) > vmem_budget:
            continue
        if best is None:
            best = t
        if batch // t >= 2:
            best = t
            break
    if best is None:
        # TODO(synk): pad + mask the batch for sizes not divisible by any candidate.
        best = batch
    return best


# --------------------------------------------------------------------------
# Wrapper
# --------------------------------------------------------------------------
def moe_gating_forward(x, w1, b1, gamma, beta, w2, b2, *,
                       tile_b=None, batch_major=False):
    """MoEGating forward (eval mode).

    x: [B, input_dim]; w1: [input_dim, hidden]; w2: [hidden, num_experts];
    b1/gamma/beta: [1, hidden]; b2: [1, num_experts].

    Returns (gate_weights, router_z_loss, load_balancing_loss).
    By default gate_weights is the lane-dense [num_experts, B] layout (no extra
    HBM transpose pass); pass batch_major=True for the module-exact [B, E].
    """
    B, D = x.shape
    H = w1.shape[1]
    E = w2.shape[1]

    # One-time tiny transposes / packing so the kernel keeps batch on lanes.
    w1t = jnp.asarray(w1).T                              # [H, D]
    w2t = jnp.asarray(w2).T                              # [E, H]
    P = max(H, E)
    params = jnp.zeros((P, 4), jnp.float32)
    params = params.at[:H, 0].set(jnp.reshape(b1, (-1,)).astype(jnp.float32))
    params = params.at[:H, 1].set(jnp.reshape(gamma, (-1,)).astype(jnp.float32))
    params = params.at[:H, 2].set(jnp.reshape(beta, (-1,)).astype(jnp.float32))
    params = params.at[:E, 3].set(jnp.reshape(b2, (-1,)).astype(jnp.float32))

    budget = _vmem_budget_bytes()
    if tile_b is None:
        tile_b = _pick_tile_b(B, D, H, E, budget)
    assert B % tile_b == 0, "batch must be divisible by the batch tile"
    num_tiles = B // tile_b

    cost = pl.CostEstimate(
        flops=2 * B * (D * H + H * E),
        transcendentals=B * (H + E + 2),
        bytes_accessed=4 * (B * (D + E) + D * H + H * E + 4 * P
                            + num_tiles * (1 + E)),
    )

    gate_t, lsum_part, gsum_part = pl.pallas_call(
        _moe_gating_kernel,
        grid=(num_tiles,),
        out_shape=(
            jax.ShapeDtypeStruct((E, B), jnp.float32),             # lane-dense gate
            jax.ShapeDtypeStruct((num_tiles, 1, 1), jnp.float32),  # per-tile sum(logsumexp)
            jax.ShapeDtypeStruct((num_tiles, E, 1), jnp.float32),  # per-tile per-expert sums
        ),
        in_specs=[
            pl.BlockSpec((tile_b, D), lambda i: (i, 0)),           # x: tiled over batch
            pl.BlockSpec((H, D), lambda i: (0, 0)),                # w1^T  (resident)
            pl.BlockSpec((E, H), lambda i: (0, 0)),                # w2^T  (resident)
            pl.BlockSpec((P, 4), lambda i: (0, 0)),                # packed b1|gamma|beta|b2
        ],
        out_specs=(
            pl.BlockSpec((E, tile_b), lambda i: (0, i)),
            pl.BlockSpec((None, 1, 1), lambda i: (i, 0, 0)),
            pl.BlockSpec((None, E, 1), lambda i: (i, 0, 0)),
        ),
        compiler_params=pltpu.CompilerParams(
            dimension_semantics=("parallel",),
            vmem_limit_bytes=budget,
        ),
        cost_estimate=cost,
    )(x, w1t, w2t, params)

    # Finish the batch reductions (tiny; done here so the grid axis stays parallel).
    z_loss = jnp.sum(lsum_part) / B
    mean_prob = jnp.sum(gsum_part, axis=(0, 2)) / B                # [E]
    # Note: log(mean_prob * E) matches the reference; -inf only if an expert
    # gets exactly zero probability across the batch (same as the PyTorch code).
    lb_loss = jnp.sum(mean_prob * jnp.log(mean_prob * E))

    if batch_major:
        return gate_t.T, z_loss, lb_loss                           # module layout [B, E]
    return gate_t, z_loss, lb_loss                                 # lane-dense [E, B]


# --------------------------------------------------------------------------
# Pure-JAX reference (mirrors MoEGating.forward in eval mode)
# --------------------------------------------------------------------------
def _reference(x, w1, b1, gamma, beta, w2, b2):
    h = x @ w1 + b1
    mu = h.mean(-1, keepdims=True)
    var = ((h - mu) ** 2).mean(-1, keepdims=True)
    hn = (h - mu) / jnp.sqrt(var + 1e-5) * gamma + beta
    act = 0.5 * hn * (1.0 + jax.lax.erf(hn / math.sqrt(2.0)))
    logits = act @ w2 + b2
    gw = jax.nn.softmax(logits, axis=-1)
    zloss = jnp.mean(jax.scipy.special.logsumexp(logits, axis=-1))
    p = gw.mean(0)
    lb = jnp.sum(p * jnp.log(p * logits.shape[-1]))
    return gw, zloss, lb


if __name__ == "__main__":
    # Small shapes consistent with the module (x = combined_z [batch, input_dim]).
    # B=256 exercises the multi-tile path (tile_b=128 -> 2 parallel grid steps).
    B, INPUT_DIM, HIDDEN_DIM, NUM_EXPERTS = 256, 16, 32, 4

    key = jax.random.PRNGKey(0)
    kx, kw1, kb1, kw2 = jax.random.split(key, 4)

    x = jax.random.normal(kx, (B, INPUT_DIM), dtype=jnp.float32)

    # Deterministic parameter init (shapes per MoEGating.__init__).
    bound1 = 1.0 / math.sqrt(INPUT_DIM)
    w1 = jax.random.uniform(kw1, (INPUT_DIM, HIDDEN_DIM), jnp.float32, -bound1, bound1)
    b1 = jax.random.uniform(kb1, (1, HIDDEN_DIM), jnp.float32, -bound1, bound1)
    gamma = jnp.ones((1, HIDDEN_DIM), jnp.float32)
    beta = jnp.zeros((1, HIDDEN_DIM), jnp.float32)
    w2 = 0.01 * jax.random.normal(kw2, (HIDDEN_DIM, NUM_EXPERTS), dtype=jnp.float32)
    b2 = jnp.zeros((1, NUM_EXPERTS), jnp.float32)

    gate_eb, zloss, lbloss = moe_gating_forward(x, w1, b1, gamma, beta, w2, b2)
    jax.block_until_ready((gate_eb, zloss, lbloss))

    # Correctness check against the pure-JAX reference (transpose only in the test;
    # the production path returns / consumes the lane-dense [E, B] layout).
    gw_ref, z_ref, lb_ref = _reference(x, w1, b1, gamma[0], beta[0], w2, b2[0])
    assert gate_eb.shape == (NUM_EXPERTS, B)
    assert jnp.allclose(gate_eb.T, gw_ref, atol=1e-5, rtol=1e-5)
    assert jnp.allclose(zloss, z_ref, atol=1e-5, rtol=1e-5)
    assert jnp.allclose(lbloss, lb_ref, atol=1e-5, rtol=1e-5)

    print("KERNEL_OK")
</pallas_src>

<mosaic_0001>
module attributes {stable_mosaic.version = 11 : i64} {
  func.func @_moe_gating_kernel(%arg0: i32, %arg1: memref<128x16xf32, #tpu.memory_space<vmem>>, %arg2: memref<32x16xf32, #tpu.memory_space<vmem>>, %arg3: memref<4x32xf32, #tpu.memory_space<vmem>>, %arg4: memref<32x4xf32, #tpu.memory_space<vmem>>, %arg5: memref<4x128xf32, #tpu.memory_space<vmem>>, %arg6: memref<1x1x1xf32, #tpu.memory_space<vmem>>, %arg7: memref<1x4x1xf32, #tpu.memory_space<vmem>>) attributes {dimension_semantics = [#tpu.dimension_semantics<parallel>], iteration_bounds = array<i64: 2>, scalar_prefetch = 0 : i64, scratch_operands = 0 : i64, tpu.core_type = #tpu.core_type<tc>, window_params = [{transform_indices = @transform_0, window_bounds = array<i64: 128, 16>}, {pipeline_mode = #tpu.pipeline_mode<synchronous>, transform_indices = @transform_1, window_bounds = array<i64: 32, 16>}, {pipeline_mode = #tpu.pipeline_mode<synchronous>, transform_indices = @transform_2, window_bounds = array<i64: 4, 32>}, {pipeline_mode = #tpu.pipeline_mode<synchronous>, transform_indices = @transform_3, window_bounds = array<i64: 32, 4>}, {transform_indices = @transform_4, window_bounds = array<i64: 4, 128>}, {transform_indices = @transform_5, window_bounds = array<i64: 1, 1, 1>}, {transform_indices = @transform_6, window_bounds = array<i64: 1, 4, 1>}]} {
    %c0 = arith.constant 0 : index
    %c0_0 = arith.constant 0 : index
    %0 = vector.load %arg4[%c0, %c0_0] : memref<32x4xf32, #tpu.memory_space<vmem>>, vector<32x4xf32>
    %1 = vector.extract_strided_slice %0 {offsets = [0, 0], sizes = [32, 1], strides = [1, 1]} : vector<32x4xf32> to vector<32x1xf32>
    %2 = vector.extract_strided_slice %0 {offsets = [0, 1], sizes = [32, 1], strides = [1, 1]} : vector<32x4xf32> to vector<32x1xf32>
    %3 = vector.extract_strided_slice %0 {offsets = [0, 2], sizes = [32, 1], strides = [1, 1]} : vector<32x4xf32> to vector<32x1xf32>
    %4 = vector.extract_strided_slice %0 {offsets = [0, 3], sizes = [4, 1], strides = [1, 1]} : vector<32x4xf32> to vector<4x1xf32>
    %c0_1 = arith.constant 0 : index
    %c0_2 = arith.constant 0 : index
    %5 = vector.load %arg2[%c0_1, %c0_2] : memref<32x16xf32, #tpu.memory_space<vmem>>, vector<32x16xf32>
    %c0_3 = arith.constant 0 : index
    %c0_4 = arith.constant 0 : index
    %6 = vector.load %arg1[%c0_3, %c0_4] : memref<128x16xf32, #tpu.memory_space<vmem>>, vector<128x16xf32>
    %cst = arith.constant dense<0.000000e+00> : vector<32x128xf32>
    %7 = tpu.matmul %5, %6, %cst {dimension_numbers = #tpu.dot_dimension_numbers<[1], [1], [0], [0], [0, 0, 1, 0], [], []>} : vector<32x16xf32>, vector<128x16xf32>, vector<32x128xf32> -> vector<32x128xf32>
    %8 = vector.broadcast %1 : vector<32x1xf32> to vector<32x128xf32>
    %9 = arith.addf %7, %8 : vector<32x128xf32>
    %cst_5 = arith.constant dense<0.000000e+00> : vector<128xf32>
    %10 = vector.multi_reduction <add>, %9, %cst_5 [0] : vector<32x128xf32> to vector<128xf32>
    %11 = vector.shape_cast %10 : vector<128xf32> to vector<1x128xf32>
    %cst_6 = arith.constant 3.200000e+01 : f32
    %12 = vector.broadcast %cst_6 : f32 to vector<1x128xf32>
    %13 = arith.divf %11, %12 : vector<1x128xf32>
    %14 = vector.broadcast %13 : vector<1x128xf32> to vector<32x128xf32>
    %15 = arith.subf %9, %14 : vector<32x128xf32>
    %16 = vector.broadcast %13 : vector<1x128xf32> to vector<32x128xf32>
    %17 = arith.subf %9, %16 : vector<32x128xf32>
    %18 = arith.mulf %15, %17 : vector<32x128xf32>
    %cst_7 = arith.constant dense<0.000000e+00> : vector<128xf32>
    %19 = vector.multi_reduction <add>, %18, %cst_7 [0] : vector<32x128xf32> to vector<128xf32>
    %20 = vector.shape_cast %19 : vector<128xf32> to vector<1x128xf32>
    %cst_8 = arith.constant 3.200000e+01 : f32
    %21 = vector.broadcast %cst_8 : f32 to vector<1x128xf32>
    %22 = arith.divf %20, %21 : vector<1x128xf32>
    %23 = vector.broadcast %13 : vector<1x128xf32> to vector<32x128xf32>
    %24 = arith.subf %9, %23 : vector<32x128xf32>
    %cst_9 = arith.constant 9.99999974E-6 : f32
    %25 = vector.broadcast %cst_9 : f32 to vector<1x128xf32>
    %26 = arith.addf %22, %25 : vector<1x128xf32>
    %27 = math.rsqrt %26 : vector<1x128xf32>
    %28 = vector.broadcast %27 : vector<1x128xf32> to vector<32x128xf32>
    %29 = arith.mulf %24, %28 : vector<32x128xf32>
    %30 = vector.broadcast %2 : vector<32x1xf32> to vector<32x128xf32>
    %31 = arith.mulf %29, %30 : vector<32x128xf32>
    %32 = vector.broadcast %3 : vector<32x1xf32> to vector<32x128xf32>
    %33 = arith.addf %31, %32 : vector<32x128xf32>
    %cst_10 = arith.constant 5.000000e-01 : f32
    %34 = vector.broadcast %cst_10 : f32 to vector<32x128xf32>
    %35 = arith.mulf %34, %33 : vector<32x128xf32>
    %cst_11 = arith.constant 0.707106769 : f32
    %36 = vector.broadcast %cst_11 : f32 to vector<32x128xf32>
    %37 = arith.mulf %33, %36 : vector<32x128xf32>
    %38 = math.erf %37 : vector<32x128xf32>
    %cst_12 = arith.constant 1.000000e+00 : f32
    %39 = vector.broadcast %cst_12 : f32 to vector<32x128xf32>
    %40 = arith.addf %39, %38 : vector<32x128xf32>
    %41 = arith.mulf %35, %40 : vector<32x128xf32>
    %c0_13 = arith.constant 0 : index
    %c0_14 = arith.constant 0 : index
    %42 = vector.load %arg3[%c0_13, %c0_14] : memref<4x32xf32, #tpu.memory_space<vmem>>, vector<4x32xf32>
    %cst_15 = arith.constant dense<0.000000e+00> : vector<4x128xf32>
    %43 = tpu.matmul %42, %41, %cst_15 {dimension_numbers = #tpu.dot_dimension_numbers<[1], [0], [0], [1], [0, 0, 1, 1], [], []>} : vector<4x32xf32>, vector<32x128xf32>, vector<4x128xf32> -> vector<4x128xf32>
    %44 = vector.broadcast %4 : vector<4x1xf32> to vector<4x128xf32>
    %45 = arith.addf %43, %44 : vector<4x128xf32>
    %cst_16 = arith.constant dense<0xFF800000> : vector<128xf32>
    %46 = vector.multi_reduction <maximumf>, %45, %cst_16 [0] : vector<4x128xf32> to vector<128xf32>
    %47 = vector.shape_cast %46 : vector<128xf32> to vector<1x128xf32>
    %48 = vector.broadcast %47 : vector<1x128xf32> to vector<4x128xf32>
    %49 = arith.subf %45, %48 : vector<4x128xf32>
    %50 = math.exp %49 : vector<4x128xf32>
    %cst_17 = arith.constant dense<0.000000e+00> : vector<128xf32>
    %51 = vector.multi_reduction <add>, %50, %cst_17 [0] : vector<4x128xf32> to vector<128xf32>
    %52 = vector.shape_cast %51 : vector<128xf32> to vector<1x128xf32>
    %53 = tpu.reciprocal %52 : vector<1x128xf32> -> vector<1x128xf32>
    %54 = vector.broadcast %53 : vector<1x128xf32> to vector<4x128xf32>
    %55 = arith.mulf %50, %54 : vector<4x128xf32>
    %c0_18 = arith.constant 0 : index
    %c0_19 = arith.constant 0 : index
    %56 = vector.load %arg5[%c0_18, %c0_19] : memref<4x128xf32, #tpu.memory_space<vmem>>, vector<4x128xf32>
    tpu.vector_store %arg5[%c0_18, %c0_19], %55 {strides = array<i32>} : memref<4x128xf32, #tpu.memory_space<vmem>>, vector<4x128xf32>,
    %57 = math.log %52 : vector<1x128xf32>
    %58 = arith.addf %47, %57 : vector<1x128xf32>
    %59 = vector.shape_cast %58 : vector<1x128xf32> to vector<1x1x128xf32>
    %cst_20 = arith.constant dense<0.000000e+00> : vector<1xf32>
    %60 = vector.multi_reduction <add>, %59, %cst_20 [1, 2] : vector<1x1x128xf32> to vector<1xf32>
    %61 = vector.shape_cast %60 : vector<1xf32> to vector<1x1x1xf32>
    %62 = vector.extract %61[0, 0, 0] : f32 from vector<1x1x1xf32>
    %63 = vector.broadcast %62 : f32 to vector<1x1xf32>
    %c0_21 = arith.constant 0 : index
    %c0_22 = arith.constant 0 : index
    %c0_23 = arith.constant 0 : index
    %64 = vector.load %arg6[%c0_21, %c0_22, %c0_23] : memref<1x1x1xf32, #tpu.memory_space<vmem>>, vector<1x1x1xf32>
    %65 = vector.shape_cast %64 : vector<1x1x1xf32> to vector<1x1xf32>
    %66 = vector.shape_cast %63 : vector<1x1xf32> to vector<1x1x1xf32>
    tpu.vector_store %arg6[%c0_21, %c0_22, %c0_23], %66 {strides = array<i32>} : memref<1x1x1xf32, #tpu.memory_space<vmem>>, vector<1x1x1xf32>,
    %cst_24 = arith.constant dense<0.000000e+00> : vector<4xf32>
    %67 = vector.multi_reduction <add>, %55, %cst_24 [1] : vector<4x128xf32> to vector<4xf32>
    %68 = vector.shape_cast %67 : vector<4xf32> to vector<4x1xf32>
    %c0_25 = arith.constant 0 : index
    %c0_26 = arith.constant 0 : index
    %c0_27 = arith.constant 0 : index
    %69 = vector.load %arg7[%c0_25, %c0_26, %c0_27] : memref<1x4x1xf32, #tpu.memory_space<vmem>>, vector<1x4x1xf32>
    %70 = vector.shape_cast %69 : vector<1x4x1xf32> to vector<4x1xf32>
    %71 = vector.shape_cast %68 : vector<4x1xf32> to vector<1x4x1xf32>
    tpu.vector_store %arg7[%c0_25, %c0_26, %c0_27], %71 {strides = array<i32>} : memref<1x4x1xf32, #tpu.memory_space<vmem>>, vector<1x4x1xf32>,
    return
  }
  func.func @transform_0(%arg0: i32) -> (i32, i32) {
    %c0_i32 = arith.constant 0 : i32
    %c0_i32_0 = arith.constant 0 : i32
    return %arg0, %c0_i32 : i32, i32
  }
  func.func @transform_1(%arg0: i32) -> (i32, i32) {
    %c0_i32 = arith.constant 0 : i32
    %c0_i32_0 = arith.constant 0 : i32
    %c0_i32_1 = arith.constant 0 : i32
    return %c0_i32, %c0_i32_0 : i32, i32
  }
  func.func @transform_2(%arg0: i32) -> (i32, i32) {
    %c0_i32 = arith.constant 0 : i32
    %c0_i32_0 = arith.constant 0 : i32
    %c0_i32_1 = arith.constant 0 : i32
    return %c0_i32, %c0_i32_0 : i32, i32
  }
  func.func @transform_3(%arg0: i32) -> (i32, i32) {
    %c0_i32 = arith.constant 0 : i32
    %c0_i32_0 = arith.constant 0 : i32
    %c0_i32_1 = arith.constant 0 : i32
    return %c0_i32, %c0_i32_0 : i32, i32
  }
  func.func @transform_4(%arg0: i32) -> (i32, i32) {
    %c0_i32 = arith.constant 0 : i32
    %c0_i32_0 = arith.constant 0 : i32
    return %c0_i32, %arg0 : i32, i32
  }
  func.func @transform_5(%arg0: i32) -> (i32, i32, i32) {
    %c0_i32 = arith.constant 0 : i32
    %c0_i32_0 = arith.constant 0 : i32
    %c0_i32_1 = arith.constant 0 : i32
    return %arg0, %c0_i32, %c0_i32_0 : i32, i32, i32
  }
  func.func @transform_6(%arg0: i32) -> (i32, i32, i32) {
    %c0_i32 = arith.constant 0 : i32
    %c0_i32_0 = arith.constant 0 : i32
    %c0_i32_1 = arith.constant 0 : i32
    return %arg0, %c0_i32, %c0_i32_0 : i32, i32, i32
  }
}

</mosaic_0001>

<llo_original>
// kernel: tpu_custom_call.1
$region0: #{tpu_custom_call.1}
  #allocation0 [shape = 'u32[]', space=smem, size = 0x4, offset = 0x4, fixed_abs, tag = 'smem constant byte address 0x4 - core index']
  #allocation1 [shape = 'u32[144,128]{1,0:T(1,128)}', space=vmem, size = 0x12000, scoped, tag = 'internal scratch']
  %s0 = inlined_call_operand.hbm [shape: f32[256,16], index: 0, kind: input, shape index: {}]
  %s1 = inlined_call_operand.hbm [shape: f32[32,16], index: 1, kind: input, shape index: {}]
  %s2 = inlined_call_operand.hbm [shape: f32[4,32], index: 2, kind: input, shape index: {}]
  %s3 = inlined_call_operand.hbm [shape: f32[32,4], index: 3, kind: input, shape index: {}]
  %s4 = inlined_call_operand.hbm [shape: f32[4,256], index: 4, kind: output, shape index: {0}]
  %s5 = inlined_call_operand.hbm [shape: f32[2,1,1], index: 5, kind: output, shape index: {1}]
  %s6 = inlined_call_operand.hbm [shape: f32[2,4,1], index: 6, kind: output, shape index: {2}]
  %7 = xla_tuple %s4, %s5, %s6
  %s8 = sld [smem:[#allocation0]]
  $region81: #{tpu_custom_call.1} parent=0
    _
  %s10 = ssub.s32 1, %s8
  %s11 = scalar_select 0, %s10, %s8
  $region1: #{tpu_custom_call.1} parent=0
    #allocation2 [shape = 'u8[131072]{0}', space=vmem, size = 0x20000, scoped, tag = 'input window, operand 0']
    #allocation3 [shape = 's32[2]{0}', space=sflag, size = 0x8, scoped, tag = 'scoped memory for tpu_custom_call.1']
    #allocation4 [shape = 's32[2]{0}', space=sflag, size = 0x8, scoped, tag = 'scoped memory for tpu_custom_call.1']
    #allocation5 [shape = 'u8[16384]{0}', space=vmem, size = 0x4000, scoped, tag = 'input window, operand 1, single buffered']
    #allocation6 [shape = 's32[1]{0}', space=sflag, size = 0x4, scoped, tag = 'scoped memory for tpu_custom_call.1']
    #allocation7 [shape = 'u8[2048]{0}', space=vmem, size = 0x800, scoped, tag = 'input window, operand 2, single buffered']
    #allocation8 [shape = 'u8[16384]{0}', space=vmem, size = 0x4000, scoped, tag = 'input window, operand 3, single buffered']
    #allocation9 [shape = 's32[1]{0}', space=sflag, size = 0x4, scoped, tag = 'scoped memory for tpu_custom_call.1']
    #allocation10 [shape = 'u8[4096]{0}', space=vmem, size = 0x1000, scoped, tag = 'output window, operand 0']
    #allocation11 [shape = 'u8[1024]{0}', space=vmem, size = 0x400, scoped, tag = 'output window, operand 1']
    #allocation12 [shape = 's32[2]{0}', space=sflag, size = 0x8, scoped, tag = 'scoped memory for tpu_custom_call.1']
    #allocation13 [shape = 'u8[4096]{0}', space=vmem, size = 0x1000, scoped, tag = 'output window, operand 2']
    %12 = vsyncpa [#allocation3], 0
    %s13 = scalar_lea.sflag [#allocation3], 1
    %14 = vsyncpa %s13, 0
    %15 = vsyncpa [#allocation6], 0
    %16 = vsyncpa [#allocation9], 0
    %17 = vsyncpa [#allocation4], 0
    %s18 = scalar_lea.sflag [#allocation4], 1
    %19 = vsyncpa %s18, 0
    %20 = vsyncpa [#allocation12], 0
    %s21 = scalar_lea.sflag [#allocation12], 1
    %22 = vsyncpa %s21, 0
    loop: start=0, step=1, limit=4
    $region2: #{tpu_custom_call.1} parent=1 // loop_pre_header
      _
    $region3: #{tpu_custom_call.1} parent=1 // loop_header
      %s24 = sphi 0, %s28
      %p25 = scmp.ge.s32.totalorder %s24, 4
      %s34 = sphi 0, %s36
      %s37 = sphi 0, %s34
      %s38 = sphi 0, %s37
      %s54 = sphi 0, %s38
      %s58 = sphi 0, %s58
      %s60 = sphi 0, %s58
      %s61 = sphi 0, %s60
      %s75 = sphi 0, %s61
      %s79 = sphi 0, %s79
      %s81 = sphi 0, %s79
      %s82 = sphi 0, %s81
      %s96 = sphi 0, %s82
      %s100 = sphi 0, %s100
      %s102 = sphi 0, %s100
      %s103 = sphi 0, %s102
      %s117 = sphi 0, %s103
      %s123 = sphi 0, %s125
      %s126 = sphi 0, %s123
      %s127 = sphi 0, %s126
      %s143 = sphi 0, %s127
      %s149 = sphi 0, %s151
      %s152 = sphi 0, %s149
      %s153 = sphi 0, %s152
      %s169 = sphi 0, %s153
      %s175 = sphi 0, %s177
      %s178 = sphi 0, %s175
      %s179 = sphi 0, %s178
      %s195 = sphi 0, %s179
    $region4: #{tpu_custom_call.1} parent=1 // loop_header_branch
      %27 = sbr.rel (%p25) target = $region8
    $region5: #{tpu_custom_call.1} parent=1 // loop_body
      %s29 = ssub.s32 %s24, 1
      %s30 = ssub.s32 %s24, 2
      %s31 = sadd.s32 %s24, 1
      %s32 = ssub.s32 %s24, %s31
      %p33 = scmp.eq.s32.totalorder %s32, 0
      %s35 = sadd.s32 %s34, 1
      %s36 = scalar_select %p33, %s34, %s35
      %p39 = pneg %p33
      %p40 = scmp.eq.s32.totalorder %s24, 1
      %p41 = por %p39, %p40
      %p42 = scmp.ne.s32.totalorder %s34, %s37
      %p43 = scmp.eq.s32.totalorder %s24, 0
      %p44 = por %p42, %p43
      %p45 = scmp.ne.s32.totalorder %s34, %s37
      %p46 = scmp.eq.s32.totalorder %s29, 1
      %p47 = por %p45, %p46
      %p48 = scmp.ne.s32.totalorder %s37, %s38
      %p49 = scmp.eq.s32.totalorder %s29, 0
      %p50 = por %p48, %p49
      %p51 = scmp.ne.s32.totalorder %s37, %s38
      %p52 = scmp.eq.s32.totalorder %s30, 1
      %p53 = por %p51, %p52
      %p55 = scmp.ne.s32.totalorder %s38, %s54
      %p56 = scmp.eq.s32.totalorder %s30, 0
      %p57 = por %p55, %p56
      %s59 = sadd.s32 %s58, 1
      %p62 = scmp.eq.s32.totalorder %s24, 1
      %p63 = scmp.ne.s32.totalorder %s58, %s60
      %p64 = scmp.eq.s32.totalorder %s24, 0
      %p65 = por %p63, %p64
      %p66 = scmp.ne.s32.totalorder %s58, %s60
      %p67 = scmp.eq.s32.totalorder %s29, 1
      %p68 = por %p66, %p67
      %p69 = scmp.ne.s32.totalorder %s60, %s61
      %p70 = scmp.eq.s32.totalorder %s29, 0
      %p71 = por %p69, %p70
      %p72 = scmp.ne.s32.totalorder %s60, %s61
      %p73 = scmp.eq.s32.totalorder %s30, 1
      %p74 = por %p72, %p73
      %p76 = scmp.ne.s32.totalorder %s61, %s75
      %p77 = scmp.eq.s32.totalorder %s30, 0
      %p78 = por %p76, %p77
      %s80 = sadd.s32 %s79, 1
      %p83 = scmp.eq.s32.totalorder %s24, 1
      %p84 = scmp.ne.s32.totalorder %s79, %s81
      %p85 = scmp.eq.s32.totalorder %s24, 0
      %p86 = por %p84, %p85
      %p87 = scmp.ne.s32.totalorder %s79, %s81
      %p88 = scmp.eq.s32.totalorder %s29, 1
      %p89 = por %p87, %p88
      %p90 = scmp.ne.s32.totalorder %s81, %s82
      %p91 = scmp.eq.s32.totalorder %s29, 0
      %p92 = por %p90, %p91
      %p93 = scmp.ne.s32.totalorder %s81, %s82
      %p94 = scmp.eq.s32.totalorder %s30, 1
      %p95 = por %p93, %p94
      %p97 = scmp.ne.s32.totalorder %s82, %s96
      %p98 = scmp.eq.s32.totalorder %s30, 0
      %p99 = por %p97, %p98
      %s101 = sadd.s32 %s100, 1
      %p104 = scmp.eq.s32.totalorder %s24, 1
      %p105 = scmp.ne.s32.totalorder %s100, %s102
      %p106 = scmp.eq.s32.totalorder %s24, 0
      %p107 = por %p105, %p106
      %p108 = scmp.ne.s32.totalorder %s100, %s102
      %p109 = scmp.eq.s32.totalorder %s29, 1
      %p110 = por %p108, %p109
      %p111 = scmp.ne.s32.totalorder %s102, %s103
      %p112 = scmp.eq.s32.totalorder %s29, 0
      %p113 = por %p111, %p112
      %p114 = scmp.ne.s32.totalorder %s102, %s103
      %p115 = scmp.eq.s32.totalorder %s30, 1
      %p116 = por %p114, %p115
      %p118 = scmp.ne.s32.totalorder %s103, %s117
      %p119 = scmp.eq.s32.totalorder %s30, 0
      %p120 = por %p118, %p119
      %s121 = ssub.s32 %s24, %s31
      %p122 = scmp.eq.s32.totalorder %s121, 0
      %s124 = sadd.s32 %s123, 1
      %s125 = scalar_select %p122, %s123, %s124
      %p128 = pneg %p122
      %p129 = scmp.eq.s32.totalorder %s24, 1
      %p130 = por %p128, %p129
      %p131 = scmp.ne.s32.totalorder %s123, %s126
      %p132 = scmp.eq.s32.totalorder %s24, 0
      %p133 = por %p131, %p132
      %p134 = scmp.ne.s32.totalorder %s123, %s126
      %p135 = scmp.eq.s32.totalorder %s29, 1
      %p136 = por %p134, %p135
      %p137 = scmp.ne.s32.totalorder %s126, %s127
      %p138 = scmp.eq.s32.totalorder %s29, 0
      %p139 = por %p137, %p138
      %p140 = scmp.ne.s32.totalorder %s126, %s127
      %p141 = scmp.eq.s32.totalorder %s30, 1
      %p142 = por %p140, %p141
      %p144 = scmp.ne.s32.totalorder %s127, %s143
      %p145 = scmp.eq.s32.totalorder %s30, 0
      %p146 = por %p144, %p145
      %s147 = ssub.s32 %s24, %s31
      %p148 = scmp.eq.s32.totalorder %s147, 0
      %s150 = sadd.s32 %s149, 1
      %s151 = scalar_select %p148, %s149, %s150
      %p154 = pneg %p148
      %p155 = scmp.eq.s32.totalorder %s24, 1
      %p156 = por %p154, %p155
      %p157 = scmp.ne.s32.totalorder %s149, %s152
      %p158 = scmp.eq.s32.totalorder %s24, 0
      %p159 = por %p157, %p158
      %p160 = scmp.ne.s32.totalorder %s149, %s152
      %p161 = scmp.eq.s32.totalorder %s29, 1
      %p162 = por %p160, %p161
      %p163 = scmp.ne.s32.totalorder %s152, %s153
      %p164 = scmp.eq.s32.totalorder %s29, 0
      %p165 = por %p163, %p164
      %p166 = scmp.ne.s32.totalorder %s152, %s153
      %p167 = scmp.eq.s32.totalorder %s30, 1
      %p168 = por %p166, %p167
      %p170 = scmp.ne.s32.totalorder %s153, %s169
      %p171 = scmp.eq.s32.totalorder %s30, 0
      %p172 = por %p170, %p171
      %s173 = ssub.s32 %s24, %s31
      %p174 = scmp.eq.s32.totalorder %s173, 0
      %s176 = sadd.s32 %s175, 1
      %s177 = scalar_select %p174, %s175, %s176
      %p180 = pneg %p174
      %p181 = scmp.eq.s32.totalorder %s24, 1
      %p182 = por %p180, %p181
      %p183 = scmp.ne.s32.totalorder %s175, %s178
      %p184 = scmp.eq.s32.totalorder %s24, 0
      %p185 = por %p183, %p184
      %p186 = scmp.ne.s32.totalorder %s175, %s178
      %p187 = scmp.eq.s32.totalorder %s29, 1
      %p188 = por %p186, %p187
      %p189 = scmp.ne.s32.totalorder %s178, %s179
      %p190 = scmp.eq.s32.totalorder %s29, 0
      %p191 = por %p189, %p190
      %p192 = scmp.ne.s32.totalorder %s178, %s179
      %p193 = scmp.eq.s32.totalorder %s30, 1
      %p194 = por %p192, %p193
      %p196 = scmp.ne.s32.totalorder %s179, %s195
      %p197 = scmp.eq.s32.totalorder %s30, 0
      %p198 = por %p196, %p197
      %p199 = scmp.le.s32.totalorder 1, %s24
      %p200 = scmp.lt.s32.totalorder %s24, 3
      %p201 = pnand %p199, %p200
      %p202 = pneg %p201
      // Predicated region
      $region9: #{tpu_custom_call.1} parent=5 // pred_check
        _
      $region10: #{tpu_custom_call.1} parent=5 // pred_check_branch
        %204 = sbr.rel (%p201) target = $region12
      $region11: #{tpu_custom_call.1} parent=5 // pred_region
        %s205 = ssub.s32 %s24, 1
        // Predicated region
        $region13: #{tpu_custom_call.1} parent=11 // pred_check
          %p206 = pneg %p71
        $region14: #{tpu_custom_call.1} parent=11 // pred_check_branch
          %208 = sbr.rel (%p206) target = $region16
        $region15: #{tpu_custom_call.1} parent=11 // pred_region
          %s210 = ssub.s32 512, 512
          %211 = vsyncadd [#allocation6], %s210
          %s212 = sshll.u32 [#allocation5], 4
          %s213 = int_to_ptr.vmem [resolvable:$true] %s212
          %218 = dma.hbm_to_vmem [thread:$0]  %s1, 512, %s213, [#allocation6], 128, 128, 8
        $region16: #{tpu_custom_call.1} parent=11 // pred_fallthru
          _
        // Predicated region
        $region17: #{tpu_custom_call.1} parent=11 // pred_check
          %p219 = pneg %p92
        $region18: #{tpu_custom_call.1} parent=11 // pred_check_branch
          %221 = sbr.rel (%p219) target = $region20
        $region19: #{tpu_custom_call.1} parent=11 // pred_region
          %s223 = ssub.s32 64, 64
          %224 = vsyncadd [#allocation6], %s223
          %s226 = sshll.u32 [#allocation7], 4
          %s227 = int_to_ptr.vmem [resolvable:$true] %s226
          %229 = dma.hbm_to_vmem [thread:$0]  %s2, 64, %s227, [#allocation6]
        $region20: #{tpu_custom_call.1} parent=11 // pred_fallthru
          _
        // Predicated region
        $region21: #{tpu_custom_call.1} parent=11 // pred_check
          %p230 = pneg %p113
        $region22: #{tpu_custom_call.1} parent=11 // pred_check_branch
          %232 = sbr.rel (%p230) target = $region24
        $region23: #{tpu_custom_call.1} parent=11 // pred_region
          %s234 = ssub.s32 512, 512
          %235 = vsyncadd [#allocation9], %s234
          %s236 = sshll.u32 [#allocation8], 4
          %s237 = int_to_ptr.vmem [resolvable:$true] %s236
          %242 = dma.hbm_to_vmem [thread:$0]  %s3, 512, %s237, [#allocation9], 128, 128, 8
        $region24: #{tpu_custom_call.1} parent=11 // pred_fallthru
          _
      $region12: #{tpu_custom_call.1} parent=5 // pred_fallthru
        _
      %p243 = scmp.lt.s32.totalorder %s24, 2
      // Predicated region
      $region25: #{tpu_custom_call.1} parent=5 // pred_check
        %p244 = pneg %p243
      $region26: #{tpu_custom_call.1} parent=5 // pred_check_branch
        %246 = sbr.rel (%p244) target = $region28
      $region27: #{tpu_custom_call.1} parent=5 // pred_region
        // Predicated region
        $region29: #{tpu_custom_call.1} parent=27 // pred_check
          %p247 = pneg %p44
        $region30: #{tpu_custom_call.1} parent=27 // pred_check_branch
          %249 = sbr.rel (%p247) target = $region32
        $region31: #{tpu_custom_call.1} parent=27 // pred_region
          %s250 = sand.u32 %s34, 1
          %s251 = scalar_lea.sflag [#allocation3], %s250
          %s252 = sand.u32 %s34, 1
          %s253 = smul.addr %s252, 128
          %s254 = scalar_lea.vmem [#allocation2], %s253
          %s255 = smul.u32 16, %s24
          %s257 = ssub.s32 2048, 2048
          %258 = vsyncadd %s251, %s257
          %s259 = smul.addr %s255, 128
          %s260 = scalar_lea.hbm %s0, %s259
          %s261 = sshll.u32 %s254, 4
          %s262 = int_to_ptr.vmem [resolvable:$true] %s261
          %267 = dma.hbm_to_vmem [thread:$0]  %s260, 2048, %s262, %s251, 128, 128, 8
        $region32: #{tpu_custom_call.1} parent=27 // pred_fallthru
          _
      $region28: #{tpu_custom_call.1} parent=5 // pred_fallthru
        _
      %p268 = scmp.le.s32.totalorder 1, %s24
      %p269 = scmp.lt.s32.totalorder %s24, 3
      %p270 = pnand %p268, %p269
      %p271 = pneg %p270
      // Predicated region
      $region33: #{tpu_custom_call.1} parent=5 // pred_check
        _
      $region34: #{tpu_custom_call.1} parent=5 // pred_check_branch
        %273 = sbr.rel (%p270) target = $region36
      $region35: #{tpu_custom_call.1} parent=5 // pred_region
        %s274 = ssub.s32 %s24, 1
        %s275 = sand.u32 %s37, 1
        %s276 = scalar_lea.sflag [#allocation3], %s275
        %s277 = sand.u32 %s37, 1
        %s278 = smul.addr %s277, 128
        %s279 = scalar_lea.vmem [#allocation2], %s278
        // Predicated region
        $region37: #{tpu_custom_call.1} parent=35 // pred_check
          %p280 = pneg %p50
        $region38: #{tpu_custom_call.1} parent=35 // pred_check_branch
          %282 = sbr.rel (%p280) target = $region40
        $region39: #{tpu_custom_call.1} parent=35 // pred_region
          %283 = dma.done %s276, 2048
        $region40: #{tpu_custom_call.1} parent=35 // pred_fallthru
          _
        // Predicated region
        $region41: #{tpu_custom_call.1} parent=35 // pred_check
          %p284 = pneg %p71
        $region42: #{tpu_custom_call.1} parent=35 // pred_check_branch
          %286 = sbr.rel (%p284) target = $region44
        $region43: #{tpu_custom_call.1} parent=35 // pred_region
          %287 = dma.done [#allocation6], 512
        $region44: #{tpu_custom_call.1} parent=35 // pred_fallthru
          _
        // Predicated region
        $region45: #{tpu_custom_call.1} parent=35 // pred_check
          %p288 = pneg %p92
        $region46: #{tpu_custom_call.1} parent=35 // pred_check_branch
          %290 = sbr.rel (%p288) target = $region48
        $region47: #{tpu_custom_call.1} parent=35 // pred_region
          %291 = dma.done [#allocation6], 64
        $region48: #{tpu_custom_call.1} parent=35 // pred_fallthru
          _
        // Predicated region
        $region49: #{tpu_custom_call.1} parent=35 // pred_check
          %p292 = pneg %p113
        $region50: #{tpu_custom_call.1} parent=35 // pred_check_branch
          %294 = sbr.rel (%p292) target = $region52
        $region51: #{tpu_custom_call.1} parent=35 // pred_region
          %295 = dma.done [#allocation9], 512
        $region52: #{tpu_custom_call.1} parent=35 // pred_fallthru
          _
        %s296 = sand.u32 %s37, 1
        %s297 = scalar_lea.sflag [#allocation3], %s296
        %s298 = sand.u32 %s37, 1
        %s299 = smul.addr %s298, 128
        %s300 = scalar_lea.vmem [#allocation2], %s299
        %p301 = pneg %p50
        %p302 = pneg %p47
        %p303 = pneg %p71
        %p304 = pneg %p68
        %p305 = pneg %p92
        %p306 = pneg %p89
        %p307 = pneg %p113
        %p308 = pneg %p110
        %p309 = pneg %p139
        %p310 = pneg %p136
        %s311 = sand.u32 %s126, 1
        %s312 = scalar_lea.sflag [#allocation4], %s311
        %s313 = sand.u32 %s126, 1
        %s314 = smul.addr %s313, 4
        %s315 = scalar_lea.vmem [#allocation10], %s314
        %p316 = pneg %p165
        %p317 = pneg %p162
        %s318 = sand.u32 %s29, 1
        %s319 = scalar_lea.sflag [#allocation12], %s318
        %s320 = sand.u32 %s152, 1
        %s321 = scalar_lea.vmem [#allocation11], %s320
        %p322 = pneg %p191
        %p323 = pneg %p188
        %s324 = sand.u32 %s29, 1
        %s325 = scalar_lea.sflag [#allocation12], %s324
        %s326 = sand.u32 %s178, 1
        %s327 = smul.addr %s326, 4
        %s328 = scalar_lea.vmem [#allocation13], %s327
        %s329 = smul.u32 16, %s29
        %v330 = vld [vmem:[#allocation8] sm:$0xff]
        %v331 = vld [vmem:[#allocation8 + $0x8] sm:$0xff]
        %v332 = vld [vmem:[#allocation8 + $0x10] sm:$0xff]
        %v333 = vld [vmem:[#allocation8 + $0x18] sm:$0xff]
        %v334 = vld [vmem:[#allocation5] sm:$0xff]
        %v335 = vld [vmem:[#allocation5 + $0x8] sm:$0xff]
        %v336 = vld [vmem:[#allocation5 + $0x10] sm:$0xff]
        %v337 = vld [vmem:[#allocation5 + $0x18] sm:$0xff]
        %v338 = vld [vmem:[%s279] sm:$0xff]
        %v339 = vld [vmem:[%s279 + $0x8] sm:$0xff]
        %v340 = vld [vmem:[%s279 + $0x10] sm:$0xff]
        %v341 = vld [vmem:[%s279 + $0x18] sm:$0xff]
        %v342 = vld [vmem:[%s279 + $0x20] sm:$0xff]
        %v343 = vld [vmem:[%s279 + $0x28] sm:$0xff]
        %v344 = vld [vmem:[%s279 + $0x30] sm:$0xff]
        %v345 = vld [vmem:[%s279 + $0x38] sm:$0xff]
        %v346 = vld [vmem:[%s279 + $0x40] sm:$0xff]
        %v347 = vld [vmem:[%s279 + $0x48] sm:$0xff]
        %v348 = vld [vmem:[%s279 + $0x50] sm:$0xff]
        %v349 = vld [vmem:[%s279 + $0x58] sm:$0xff]
        %v350 = vld [vmem:[%s279 + $0x60] sm:$0xff]
        %v351 = vld [vmem:[%s279 + $0x68] sm:$0xff]
        %v352 = vld [vmem:[%s279 + $0x70] sm:$0xff]
        %v353 = vld [vmem:[%s279 + $0x78] sm:$0xff]
        %355 = vset.pattern.permute.xlu0 0
        %356 = vperm.xlu0 %355, %v330
        %v357 = vpop.permute.xlu0 %356
        %360 = vset.pattern.permute.xlu0 0
        %361 = vperm.xlu0 %360, %v331
        %v362 = vpop.permute.xlu0 %361
        %365 = vset.pattern.permute.xlu0 0
        %366 = vperm.xlu0 %365, %v332
        %v367 = vpop.permute.xlu0 %366
        %370 = vset.pattern.permute.xlu0 0
        %371 = vperm.xlu0 %370, %v333
        %v372 = vpop.permute.xlu0 %371
        %vm374 = vcmask 130048
        %v376 = vsel %vm374, %v334, 0
        %v379 = vsel %vm374, %v335, 0
        %v382 = vsel %vm374, %v336, 0
        %v385 = vsel %vm374, %v337, 0
        %v388 = vsel %vm374, %v338, 0
        %v391 = vsel %vm374, %v339, 0
        %v394 = vsel %vm374, %v340, 0
        %v397 = vsel %vm374, %v341, 0
        %v400 = vsel %vm374, %v342, 0
        %v403 = vsel %vm374, %v343, 0
        %v406 = vsel %vm374, %v344, 0
        %v409 = vsel %vm374, %v345, 0
        %v412 = vsel %vm374, %v346, 0
        %v415 = vsel %vm374, %v347, 0
        %v418 = vsel %vm374, %v348, 0
        %v421 = vsel %vm374, %v349, 0
        %v424 = vsel %vm374, %v350, 0
        %v427 = vsel %vm374, %v351, 0
        %v430 = vsel %vm374, %v352, 0
        %v433 = vsel %vm374, %v353, 0
        %435 = vmatprep.subr.mxu0 0.0
        %436 = vmatpush1.xpose.msra.mxu0 %v388
        %437 = vmatprep.subr.mxu0 0.0
        %438 = vmatpush1.xpose.msra.mxu0 %v391
        %439 = vmatprep.subr.mxu0 0.0
        %440 = vmatpush1.xpose.msra.mxu0 %v394
        %441 = vmatprep.subr.mxu0 0.0
        %442 = vmatpush1.xpose.msra.mxu0 %v397
        %443 = vmatprep.subr.mxu0 0.0
        %444 = vmatpush1.xpose.msra.mxu0 %v400
        %445 = vmatprep.subr.mxu0 0.0
        %446 = vmatpush1.xpose.msra.mxu0 %v403
        %447 = vmatprep.subr.mxu0 0.0
        %448 = vmatpush1.xpose.msra.mxu0 %v406
        %449 = vmatprep.subr.mxu0 0.0
        %450 = vmatpush1.xpose.msra.mxu0 %v409
        %451 = vmatprep.subr.mxu0 0.0
        %452 = vmatpush1.xpose.msra.mxu0 %v412
        %453 = vmatprep.subr.mxu0 0.0
        %454 = vmatpush1.xpose.msra.mxu0 %v415
        %455 = vmatprep.subr.mxu0 0.0
        %456 = vmatpush1.xpose.msra.mxu0 %v418
        %457 = vmatprep.subr.mxu0 0.0
        %458 = vmatpush1.xpose.msra.mxu0 %v421
        %459 = vmatprep.subr.mxu0 0.0
        %460 = vmatpush1.xpose.msra.mxu0 %v424
        %461 = vmatprep.subr.mxu0 0.0
        %462 = vmatpush1.xpose.msra.mxu0 %v427
        %463 = vmatprep.subr.mxu0 0.0
        %464 = vmatpush1.xpose.msra.mxu0 %v430
        %465 = vmatprep.subr.mxu0 0.0
        %466 = vmatpush1.xpose.msra.mxu0 %v433
        %467 = vmatprep.subr.mxu0 0.0
        %468 = vmatpush1.xpose.msra.mxu0 0.0
        %469 = vmatprep.subr.mxu0 0.0
        %470 = vmatpush1.xpose.msra.mxu0 0.0
        %471 = vmatprep.subr.mxu0 0.0
        %472 = vmatpush1.xpose.msra.mxu0 0.0
        %473 = vmatprep.subr.mxu0 0.0
        %474 = vmatpush1.xpose.msra.mxu0 0.0
        %475 = vmatprep.subr.mxu0 0.0
        %476 = vmatpush1.xpose.msra.mxu0 0.0
        %477 = vmatprep.subr.mxu0 0.0
        %478 = vmatpush1.xpose.msra.mxu0 0.0
        %479 = vmatprep.subr.mxu0 0.0
        %480 = vmatpush1.xpose.msra.mxu0 0.0
        %481 = vmatprep.subr.mxu0 0.0
        %482 = vmatpush1.xpose.msra.mxu0 0.0
        %483 = vmatprep.subr.mxu0 0.0
        %484 = vmatpush1.xpose.msra.mxu0 0.0
        %485 = vmatprep.subr.mxu0 0.0
        %486 = vmatpush1.xpose.msra.mxu0 0.0
        %487 = vmatprep.subr.mxu0 0.0
        %488 = vmatpush1.xpose.msra.mxu0 0.0
        %489 = vmatprep.subr.mxu0 0.0
        %490 = vmatpush1.xpose.msra.mxu0 0.0
        %491 = vmatprep.subr.mxu0 0.0
        %492 = vmatpush1.xpose.msra.mxu0 0.0
        %493 = vmatprep.subr.mxu0 0.0
        %494 = vmatpush1.xpose.msra.mxu0 0.0
        %495 = vmatprep.subr.mxu0 0.0
        %496 = vmatpush1.xpose.msra.mxu0 0.0
        %497 = vmatprep.subr.mxu0 0.0
        %498 = vmatpush1.xpose.msra.mxu0 0.0
        %499 = vmatprep.mubr.f32.mxu0 0.0
        %500 = vmatmul.mubr.f32.gmra.mrb[0].mxu0 %v376
        %v501 = vpop.f32.mrb[0].mxu0
        %v502 = vadd.f32 %v357, %v501
        %v503 = vpop.f32.mrb[0].mxu0
        %504 = vmatprep.mubr.f32.mxu0 0.0
        %505 = vmatmul.mubr.f32.gmra.mrb[0].mxu0 %v379
        %v506 = vpop.f32.mrb[0].mxu0
        %v507 = vadd.f32 %v362, %v506
        %v508 = vpop.f32.mrb[0].mxu0
        %509 = vmatprep.mubr.f32.mxu0 0.0
        %510 = vmatmul.mubr.f32.gmra.mrb[0].mxu0 %v382
        %v511 = vpop.f32.mrb[0].mxu0
        %v512 = vadd.f32 %v367, %v511
        %v513 = vpop.f32.mrb[0].mxu0
        %514 = vmatprep.mubr.f32.mxu0 0.0
        %515 = vmatmul.mubr.f32.gmra.mrb[0].mxu0 %v385
        %v516 = vpop.f32.mrb[0].mxu0
        %v517 = vadd.f32 %v372, %v516
        %v518 = vpop.f32.mrb[0].mxu0
        %519 = vdwg.mxu0
        %v520 = vadd.f32 %v502, %v507
        %v521 = vadd.f32 %v520, %v512
        %v522 = vadd.f32 %v521, %v517
        %v523 = vrot.slane %v522, 4
        %v524 = vadd.f32 %v522, %v523
        %v525 = vrot.slane %v524, 2
        %v526 = vadd.f32 %v524, %v525
        %v527 = vrot.slane %v526, 1
        %v528 = vadd.f32 %v526, %v527
        %v529 = vrcp.pop 32.0
        %v530 = vmul.f32 %v528, %v529
        %v531 = vsub.f32 %v502, %v530
        %v532 = vsub.f32 %v507, %v530
        %v533 = vsub.f32 %v512, %v530
        %v534 = vsub.f32 %v517, %v530
        %v535 = vmul.f32 %v531, %v531
        %v536 = vmul.f32 %v532, %v532
        %v537 = vmul.f32 %v533, %v533
        %v538 = vmul.f32 %v534, %v534
        %v539 = vadd.f32 %v535, %v536
        %v540 = vadd.f32 %v539, %v537
        %v541 = vadd.f32 %v540, %v538
        %v542 = vrot.slane %v541, 4
        %v543 = vadd.f32 %v541, %v542
        %v544 = vrot.slane %v543, 2
        %v545 = vadd.f32 %v543, %v544
        %v546 = vrot.slane %v545, 1
        %v547 = vadd.f32 %v545, %v546
        %v548 = vmul.f32 %v547, %v529
        %v549 = vadd.f32 %v548, 1e-05
        %v550 = vrsqrt.pop %v549
        %v551 = vmul.f32 %v531, %v550
        %v552 = vmul.f32 %v532, %v550
        %v553 = vmul.f32 %v533, %v550
        %v554 = vmul.f32 %v534, %v550
        %555 = vset.pattern.permute.xlu0 1
        %556 = vperm.xlu0 %555, %v330
        %v557 = vpop.permute.xlu0 %556
        %559 = vset.pattern.permute.xlu0 1
        %560 = vperm.xlu0 %559, %v331
        %v561 = vpop.permute.xlu0 %560
        %563 = vset.pattern.permute.xlu0 1
        %564 = vperm.xlu0 %563, %v332
        %v565 = vpop.permute.xlu0 %564
        %567 = vset.pattern.permute.xlu0 1
        %568 = vperm.xlu0 %567, %v333
        %v569 = vpop.permute.xlu0 %568
        %v571 = vmul.f32 %v551, %v557
        %v572 = vmul.f32 %v552, %v561
        %v573 = vmul.f32 %v553, %v565
        %v574 = vmul.f32 %v554, %v569
        %575 = vset.pattern.permute.xlu0 2
        %576 = vperm.xlu0 %575, %v330
        %v577 = vpop.permute.xlu0 %576
        %579 = vset.pattern.permute.xlu0 2
        %580 = vperm.xlu0 %579, %v331
        %v581 = vpop.permute.xlu0 %580
        %583 = vset.pattern.permute.xlu0 2
        %584 = vperm.xlu0 %583, %v332
        %v585 = vpop.permute.xlu0 %584
        %587 = vset.pattern.permute.xlu0 2
        %588 = vperm.xlu0 %587, %v333
        %v589 = vpop.permute.xlu0 %588
        %v591 = vadd.f32 %v571, %v577
        %v592 = vadd.f32 %v572, %v581
        %v593 = vadd.f32 %v573, %v585
        %v594 = vadd.f32 %v574, %v589
        %v595 = vmul.f32 %v591, 0.5
        %v596 = vmul.f32 %v592, 0.5
        %v597 = vmul.f32 %v593, 0.5
        %v598 = vmul.f32 %v594, 0.5
        %v599 = vmul.f32 %v591, 0.70710677
        %v600 = vmul.f32 %v592, 0.70710677
        %v601 = vmul.f32 %v593, 0.70710677
        %v602 = vmul.f32 %v594, 0.70710677
        %v603 = verf.f32.pop %v599
        %v604 = verf.f32.pop %v600
        %v605 = verf.f32.pop %v601
        %v606 = verf.f32.pop %v602
        %v607 = vadd.f32 %v603, 1.0
        %v608 = vadd.f32 %v604, 1.0
        %v609 = vadd.f32 %v605, 1.0
        %v610 = vadd.f32 %v606, 1.0
        %v611 = vmul.f32 %v595, %v607
        %v612 = vmul.f32 %v596, %v608
        %v613 = vmul.f32 %v597, %v609
        %v614 = vmul.f32 %v598, %v610
        %v615 = vld [vmem:[#allocation7] sm:$0xf]
        %616 = vset.pattern.permute.xlu0 3
        %617 = vperm.xlu0 %616, %v330
        %v618 = vpop.permute.xlu0 %617
        %vm620 = vcmask 261120
        %v622 = vsel %vm620, %v615, 0
        %624 = vmatprep.subr.mxu0 0.0
        %625 = vmatpush1.msra.mxu0 %v611
        %626 = vmatprep.subr.mxu0 0.0
        %627 = vmatpush1.msra.mxu0 %v612
        %628 = vmatprep.subr.mxu0 0.0
        %629 = vmatpush1.msra.mxu0 %v613
        %630 = vmatprep.subr.mxu0 0.0
        %631 = vmatpush1.msra.mxu0 %v614
        %632 = vmatprep.subr.mxu0 0.0
        %633 = vmatpush1.msra.mxu0 0.0
        %634 = vmatprep.subr.mxu0 0.0
        %635 = vmatpush1.msra.mxu0 0.0
        %636 = vmatprep.subr.mxu0 0.0
        %637 = vmatpush1.msra.mxu0 0.0
        %638 = vmatprep.subr.mxu0 0.0
        %639 = vmatpush1.msra.mxu0 0.0
        %640 = vmatprep.subr.mxu0 0.0
        %641 = vmatpush1.msra.mxu0 0.0
        %642 = vmatprep.subr.mxu0 0.0
        %643 = vmatpush1.msra.mxu0 0.0
        %644 = vmatprep.subr.mxu0 0.0
        %645 = vmatpush1.msra.mxu0 0.0
        %646 = vmatprep.subr.mxu0 0.0
        %647 = vmatpush1.msra.mxu0 0.0
        %648 = vmatprep.subr.mxu0 0.0
        %649 = vmatpush1.msra.mxu0 0.0
        %650 = vmatprep.subr.mxu0 0.0
        %651 = vmatpush1.msra.mxu0 0.0
        %652 = vmatprep.subr.mxu0 0.0
        %653 = vmatpush1.msra.mxu0 0.0
        %654 = vmatprep.subr.mxu0 0.0
        %655 = vmatpush1.msra.mxu0 0.0
        %656 = vmatprep.subr.mxu0 0.0
        %657 = vmatpush1.msra.mxu0 0.0
        %658 = vmatprep.subr.mxu0 0.0
        %659 = vmatpush1.msra.mxu0 0.0
        %660 = vmatprep.subr.mxu0 0.0
        %661 = vmatpush1.msra.mxu0 0.0
        %662 = vmatprep.subr.mxu0 0.0
        %663 = vmatpush1.msra.mxu0 0.0
        %664 = vmatprep.subr.mxu0 0.0
        %665 = vmatpush1.msra.mxu0 0.0
        %666 = vmatprep.subr.mxu0 0.0
        %667 = vmatpush1.msra.mxu0 0.0
        %668 = vmatprep.subr.mxu0 0.0
        %669 = vmatpush1.msra.mxu0 0.0
        %670 = vmatprep.subr.mxu0 0.0
        %671 = vmatpush1.msra.mxu0 0.0
        %672 = vmatprep.subr.mxu0 0.0
        %673 = vmatpush1.msra.mxu0 0.0
        %674 = vmatprep.subr.mxu0 0.0
        %675 = vmatpush1.msra.mxu0 0.0
        %676 = vmatprep.subr.mxu0 0.0
        %677 = vmatpush1.msra.mxu0 0.0
        %678 = vmatprep.subr.mxu0 0.0
        %679 = vmatpush1.msra.mxu0 0.0
        %680 = vmatprep.subr.mxu0 0.0
        %681 = vmatpush1.msra.mxu0 0.0
        %682 = vmatprep.subr.mxu0 0.0
        %683 = vmatpush1.msra.mxu0 0.0
        %684 = vmatprep.subr.mxu0 0.0
        %685 = vmatpush1.msra.mxu0 0.0
        %686 = vmatprep.subr.mxu0 0.0
        %687 = vmatpush1.msra.mxu0 0.0
        %688 = vmatprep.mubr.f32.mxu0 0.0
        %689 = vmatmul.mubr.f32.gmra.mrb[0].mxu0 %v622
        %v690 = vpop.f32.mrb[0].mxu0
        %v691 = vadd.f32 %v618, %v690
        %v692 = vpop.f32.mrb[0].mxu0
        %693 = vdwg.mxu0
        %vm694 = vcmask 1043456
        %v695 = vsel %vm694, %v691, -inf
        %v696 = vrot.slane %v695, 4
        %v697 = vmax.f32 %v695, %v696
        %v698 = vrot.slane %v697, 2
        %v699 = vmax.f32 %v697, %v698
        %v700 = vrot.slane %v699, 1
        %v701 = vmax.f32 %v699, %v700
        %v702 = vsub.f32 %v691, %v701
        %v703 = vmul.f32 %v702, 1.442695
        %v704 = vpow.pop %v703
        %v705 = vsel %vm694, %v704, 0.0
        %v706 = vrot.slane %v705, 4
        %v707 = vadd.f32 %v705, %v706
        %v708 = vrot.slane %v707, 2
        %v709 = vadd.f32 %v707, %v708
        %v710 = vrot.slane %v709, 1
        %v711 = vadd.f32 %v709, %v710
        %v712 = vrcp.pop %v711
        %v713 = vmul.f32 %v704, %v712
        %714 = vst [vmem:[%s315] sm:$0xf] %v713
        %v715 = vlog2.pop %v711
        %v716 = vmul.f32 %v715, 0.6931472
        %v717 = vadd.f32 %v701, %v716
        %vm718 = vcmask 1040384
        %v719 = vsel %vm718, %v717, 0.0
        %720 = vadd.xlane.f32.xlu0 %v719
        %v721 = vpop.xlane.xlu0 %720
        %v722 = vrot.slane %v721, 4
        %v723 = vadd.f32 %v721, %v722
        %v724 = vrot.slane %v723, 2
        %v725 = vadd.f32 %v723, %v724
        %v726 = vrot.slane %v725, 1
        %v727 = vadd.f32 %v725, %v726
        %s728 = vtos %v727
        %v729 = vstv %s728
        %vm730 = vcmask 0
        %731 = vst.msk [vmem:[%s321] sm:$0x1] %vm730, %v729
        %v732 = vsel %vm694, %v713, 0.0
        %733 = vadd.xlane.f32.xlu0 %v732
        %v734 = vpop.xlane.xlu0 %733
        %vm735 = vcmask 3072
        %736 = vst.msk [vmem:[%s328] sm:$0xf] %vm735, %v734
        %s737 = sand.u32 %s126, 1
        %s738 = scalar_lea.sflag [#allocation4], %s737
        %s739 = sand.u32 %s126, 1
        %s740 = smul.addr %s739, 4
        %s741 = scalar_lea.vmem [#allocation10], %s740
        %s742 = sand.u32 %s29, 1
        %s743 = scalar_lea.sflag [#allocation12], %s742
        %s744 = sand.u32 %s152, 1
        %s745 = scalar_lea.vmem [#allocation11], %s744
        %s746 = sand.u32 %s29, 1
        %s747 = scalar_lea.sflag [#allocation12], %s746
        %s748 = sand.u32 %s178, 1
        %s749 = smul.addr %s748, 4
        %s750 = scalar_lea.vmem [#allocation13], %s749
        // Predicated region
        $region53: #{tpu_custom_call.1} parent=35 // pred_check
          %p751 = pneg %p136
        $region54: #{tpu_custom_call.1} parent=35 // pred_check_branch
          %753 = sbr.rel (%p751) target = $region56
        $region55: #{tpu_custom_call.1} parent=35 // pred_region
          %s755 = ssub.s32 64, 64
          %756 = vsyncadd %s738, %s755
          %s757 = smul.addr %s29, 64
          %s758 = scalar_lea.hbm %s4, %s757
          %s760 = sshll.u32 %s741, 4
          %s761 = int_to_ptr.vmem [resolvable:$true] %s760
          %763 = dma.vmem_to_hbm [thread:$0]  %s761, 64, %s758, %s738
        $region56: #{tpu_custom_call.1} parent=35 // pred_fallthru
          _
        // Predicated region
        $region57: #{tpu_custom_call.1} parent=35 // pred_check
          %p764 = pneg %p162
        $region58: #{tpu_custom_call.1} parent=35 // pred_check_branch
          %766 = sbr.rel (%p764) target = $region60
        $region59: #{tpu_custom_call.1} parent=35 // pred_region
          %s768 = ssub.s32 16, 16
          %769 = vsyncadd %s743, %s768
          %s770 = smul.addr %s29, 16
          %s771 = scalar_lea.hbm %s5, %s770
          %s773 = sshll.u32 %s745, 4
          %s774 = int_to_ptr.vmem [resolvable:$true] %s773
          %776 = dma.vmem_to_hbm [thread:$0]  %s774, 16, %s771, %s743
        $region60: #{tpu_custom_call.1} parent=35 // pred_fallthru
          _
        // Predicated region
        $region61: #{tpu_custom_call.1} parent=35 // pred_check
          %p777 = pneg %p188
        $region62: #{tpu_custom_call.1} parent=35 // pred_check_branch
          %779 = sbr.rel (%p777) target = $region64
        $region63: #{tpu_custom_call.1} parent=35 // pred_region
          %s781 = ssub.s32 64, 64
          %782 = vsyncadd %s747, %s781
          %s783 = smul.addr %s29, 64
          %s784 = scalar_lea.hbm %s6, %s783
          %s786 = sshll.u32 %s750, 4
          %s787 = int_to_ptr.vmem [resolvable:$true] %s786
          %789 = dma.vmem_to_hbm [thread:$0]  %s787, 64, %s784, %s747
        $region64: #{tpu_custom_call.1} parent=35 // pred_fallthru
          _
      $region36: #{tpu_custom_call.1} parent=5 // pred_fallthru
        _
      %p790 = scmp.le.s32.totalorder 2, %s24
      // Predicated region
      $region65: #{tpu_custom_call.1} parent=5 // pred_check
        %p791 = pneg %p790
      $region66: #{tpu_custom_call.1} parent=5 // pred_check_branch
        %793 = sbr.rel (%p791) target = $region68
      $region67: #{tpu_custom_call.1} parent=5 // pred_region
        %s794 = ssub.s32 %s24, 2
        // Predicated region
        $region69: #{tpu_custom_call.1} parent=67 // pred_check
          %p795 = pneg %p142
        $region70: #{tpu_custom_call.1} parent=67 // pred_check_branch
          %797 = sbr.rel (%p795) target = $region72
        $region71: #{tpu_custom_call.1} parent=67 // pred_region
          %s798 = sand.u32 %s127, 1
          %s799 = scalar_lea.sflag [#allocation4], %s798
          %s800 = sand.u32 %s127, 1
          %s801 = smul.addr %s800, 4
          %s802 = scalar_lea.vmem [#allocation10], %s801
          %803 = dma.done %s799, 64
        $region72: #{tpu_custom_call.1} parent=67 // pred_fallthru
          _
        // Predicated region
        $region73: #{tpu_custom_call.1} parent=67 // pred_check
          %p804 = pneg %p168
        $region74: #{tpu_custom_call.1} parent=67 // pred_check_branch
          %806 = sbr.rel (%p804) target = $region76
        $region75: #{tpu_custom_call.1} parent=67 // pred_region
          %s807 = sand.u32 %s30, 1
          %s808 = scalar_lea.sflag [#allocation12], %s807
          %s809 = sand.u32 %s153, 1
          %s810 = scalar_lea.vmem [#allocation11], %s809
          %811 = dma.done %s808, 16
        $region76: #{tpu_custom_call.1} parent=67 // pred_fallthru
          _
        // Predicated region
        $region77: #{tpu_custom_call.1} parent=67 // pred_check
          %p812 = pneg %p194
        $region78: #{tpu_custom_call.1} parent=67 // pred_check_branch
          %814 = sbr.rel (%p812) target = $region80
        $region79: #{tpu_custom_call.1} parent=67 // pred_region
          %s815 = sand.u32 %s30, 1
          %s816 = scalar_lea.sflag [#allocation12], %s815
          %s817 = sand.u32 %s179, 1
          %s818 = smul.addr %s817, 4
          %s819 = scalar_lea.vmem [#allocation13], %s818
          %820 = dma.done %s816, 64
        $region80: #{tpu_custom_call.1} parent=67 // pred_fallthru
          _
      $region68: #{tpu_custom_call.1} parent=5 // pred_fallthru
        _
    $region6: #{tpu_custom_call.1} parent=1 // loop_footer
      %s28 = sadd.s32 1, %s24
    $region7: #{tpu_custom_call.1} parent=1 // loop_footer_branch
      %23 = sbr.rel target = $region3
    $region8: #{tpu_custom_call.1} parent=1 // loop_exit
      _
    %821 = vsyncpa [#allocation3], 1
    %s822 = scalar_lea.sflag [#allocation3], 1
    %823 = vsyncpa %s822, 1
    %824 = vsyncpa [#allocation6], 1
    %825 = vsyncpa [#allocation9], 1
    %826 = vsyncpa [#allocation4], 1
    %s827 = scalar_lea.sflag [#allocation4], 1
    %828 = vsyncpa %s827, 1
    %829 = vsyncpa [#allocation12], 1
    %s830 = scalar_lea.sflag [#allocation12], 1
    %831 = vsyncpa %s830, 1

</llo_original>
